<compile_context>
chip_gen: v6e
topology: v6e:2x2x1
jax: 0.10.0
libtpu: 0.0.40
codegen_flags: <defaults>
</compile_context>

<pallas_src>
import math

import jax
import jax.numpy as jnp
from jax.experimental import pallas as pl
from jax.experimental.pallas import tpu as pltpu

_SUBLANE = 8
_LANE = 128


def _round_up(n, m):
    return ((n + m - 1) // m) * m


def _round_down(n, m):
    return (n // m) * m


# ---------------------------------------------------------------------------
# Kernel
# ---------------------------------------------------------------------------
def hnode_ce_kernel(x_ref, w_ref, b_ref, y_ref, loss_ref):
    """Per-sample cross-entropy for one tile of TM samples.

    x_ref:    (TM, F)     x dtype  feature rows (Dropout == identity, eval mode)
    w_ref:    (F, C_pad)  w dtype  Linear weight, transposed + zero lane-padded
    b_ref:    (1, C_pad)  f32      Linear bias; padded lanes hold -1e30 (~ -inf)
    y_ref:    (TM, 1)     i32      target child index per sample, in [0, C)
    loss_ref: (TM, 1)     f32      per-sample CE loss
    """
    # logits = x @ W^T + b on the MXU with f32 accumulation.
    logits = jnp.dot(x_ref[...], w_ref[...], preferred_element_type=jnp.float32)
    logits = logits + b_ref[...]          # padded class lanes are already ~-inf

    # Numerically stable logsumexp over the class axis (f32 on all generations).
    m = jnp.max(logits, axis=-1, keepdims=True)
    lse = m + jnp.log(jnp.sum(jnp.exp(logits - m), axis=-1, keepdims=True))

    # logits[row, y[row]] via a vectorized lane compare; y < C so padded lanes
    # (sitting at -1e30) can never match.
    col = jax.lax.broadcasted_iota(jnp.int32, logits.shape, dimension=1)
    picked = jnp.sum(jnp.where(col == y_ref[...], logits, 0.0),
                     axis=-1, keepdims=True)

    # TODO(synk): lane-dense (1, TM) loss rows (XLU-transpose logits and reduce
    # along sublanes) would remove the masked (TM, 1) column stores; kept the
    # column layout for lowering robustness (output bytes < 1/32 of the x stream).
    loss_ref[...] = lse - picked


# ---------------------------------------------------------------------------
# One-time parameter preparation (model-load time, NOT the per-call hot path)
# ---------------------------------------------------------------------------
def _pad_classes(c):
    # Lane-dense class axis: one vreg width (128) minimum; past that, pad to a
    # multiple of 256 so v6e/v7x's 256-wide MXUs are filled (128 stays fine on
    # v5e's 128x128 MXUs and wastes nothing for tiny C).
    if c <= _LANE:
        return _LANE
    return _round_up(c, 256)


def prepare_hnode_params(weight, bias, *, dtype=jnp.float32):
    """Prepare an HNode classifier once and reuse across calls.

    weight: (C, F) PyTorch nn.Linear weight layout
    bias:   (C,)   PyTorch nn.Linear bias
    dtype:  storage dtype for weight (and x): jnp.bfloat16 halves the x DMA
            stream and uses the native bf16 MXU; softmax math stays f32.
    """
    c, f = weight.shape
    c_pad = _pad_classes(c)
    w_pad = jnp.zeros((f, c_pad), dtype=dtype).at[:, :c].set(weight.T.astype(dtype))
    # Bias padded with -1e30: padded logits are ~-inf before max/logsumexp, so the
    # kernel needs no `col < C` mask. Bias stays f32 (added after f32 accumulation).
    b_pad = jnp.full((1, c_pad), -1e30, dtype=jnp.float32).at[0, :c].set(
        bias.astype(jnp.float32))
    # TODO(synk): fuse sibling HNode classifiers along the class-lane axis (this is
    # exactly the packing layout for it) + scalar-prefetched per-sample class
    # offsets, so tiny-C nodes stop wasting ~97% of each lane-wide op.
    return {"w_pad": w_pad, "b_pad": b_pad, "num_classes": c}


# ---------------------------------------------------------------------------
# Tiling helpers
# ---------------------------------------------------------------------------
def _choose_tm(b, tm_req, *, min_tiles=2):
    """Sublane-aligned batch tile <= tm_req; keep >= min_tiles grid steps when the
    batch allows so the 'parallel' grid axis can shard across both TensorCores on
    v7x (no effect on single-TC v5e/v6e)."""
    tm = min(tm_req, _round_up(b, _SUBLANE))
    tm = max(_SUBLANE, _round_down(tm, _SUBLANE))
    if b // tm < min_tiles:
        half = _round_down(b // min_tiles, _SUBLANE)
        if half >= _SUBLANE:
            tm = half
    return tm


def _shrink_tm_for_vmem(tm, f, c_pad, x_bytes, w_bytes,
                        budget_bytes=12 * 1024 * 1024):
    """Conservative VMEM budget: fits v5e's 16 MiB scoped default and leaves ample
    headroom on v7x's 64 MiB physical VMEM (half of v5e/v6e). Alternative: raise
    vmem_limit_bytes via pltpu.CompilerParams."""
    def est(t):
        return (2 * t * f * x_bytes          # double-buffered x tiles
                + f * c_pad * w_bytes        # resident weight
                + c_pad * 4                  # resident bias
                + 2 * t * 4 * 2              # y + loss tiles (double-buffered)
                + 2 * t * c_pad * 4)         # logits / softmax temporaries
    while tm > _SUBLANE and est(tm) > budget_bytes:
        tm = max(_SUBLANE, _round_down(tm // 2, _SUBLANE))
    return tm


# ---------------------------------------------------------------------------
# pallas_call wrapper
# ---------------------------------------------------------------------------
def _hnode_call(x, y2d, w_pad, b_pad, *, tm, n_rows):
    f = x.shape[1]
    c_pad = w_pad.shape[1]
    cost = pl.CostEstimate(
        flops=2 * n_rows * f * c_pad,
        transcendentals=n_rows * (c_pad + 1),      # exp per logit + log per row
        bytes_accessed=(n_rows * f * x.dtype.itemsize
                        + f * c_pad * w_pad.dtype.itemsize
                        + c_pad * 4 + n_rows * 4 + n_rows * 4),
    )
    return pl.pallas_call(
        hnode_ce_kernel,
        out_shape=jax.ShapeDtypeStruct((n_rows, 1), jnp.float32),
        grid_spec=pltpu.PrefetchScalarGridSpec(
            num_scalar_prefetch=0,
            grid=(n_rows // tm,),
            in_specs=[
                pl.BlockSpec((tm, f), lambda i: (i, 0)),       # x rows, tiled
                pl.BlockSpec((f, c_pad), lambda i: (0, 0)),    # weight, resident
                pl.BlockSpec((1, c_pad), lambda i: (0, 0)),    # bias, resident
                pl.BlockSpec((tm, 1), lambda i: (i, 0)),       # targets, tiled
            ],
            out_specs=pl.BlockSpec((tm, 1), lambda i: (i, 0)),
        ),
        compiler_params=pltpu.CompilerParams(
            dimension_semantics=("parallel",),                 # shard tiles (v7x)
        ),
        cost_estimate=cost,
    )(x, w_pad, b_pad, y2d)


def hnode_losses(x, y_ind, params, *, tm=512):
    """Batched HNode losses: per-sample CE of Linear(Dropout(x)) vs y_ind.

    x: (B, F) features; y_ind: (B,) int targets; params: prepare_hnode_params(...)
    Returns (B,) f32 losses.
    """
    w_pad, b_pad = params["w_pad"], params["b_pad"]
    b_total, f = x.shape
    assert w_pad.shape[0] == f
    c_pad = w_pad.shape[1]

    # Optional bf16 input path: match the prepared weight dtype (ideally x already
    # arrives in this dtype upstream so this cast is a no-op).
    if x.dtype != w_pad.dtype:
        x = x.astype(w_pad.dtype)
    y2d = y_ind.astype(jnp.int32).reshape(b_total, 1)

    tm = _choose_tm(b_total, tm)
    tm = _shrink_tm_for_vmem(tm, f, c_pad, x.dtype.itemsize, w_pad.dtype.itemsize)
    # TODO(synk): for very large F, add a feature (K) grid axis that accumulates
    # logits into a VMEM scratch (pl.when init/finalize) instead of shrinking tm.

    b_main = _round_down(b_total, tm)
    pieces = []
    if b_main:
        # Main call reads the ORIGINAL x buffer (no host-side pad/copy of x); the
        # grid simply covers the first b_main rows.
        pieces.append(_hnode_call(x, y2d, w_pad, b_pad, tm=tm, n_rows=b_main)[:, 0])
    tail = b_total - b_main
    if tail:
        # Only the (small, < tm rows) ragged remainder gets padded.
        tm_t = _round_up(tail, _SUBLANE)
        x_t, y_t = x[b_main:], y2d[b_main:]
        if tm_t != tail:
            x_t = jnp.pad(x_t, ((0, tm_t - tail), (0, 0)))
            y_t = jnp.pad(y_t, ((0, tm_t - tail), (0, 0)))
        pieces.append(
            _hnode_call(x_t, y_t, w_pad, b_pad, tm=tm_t, n_rows=tm_t)[:tail, 0])
    return pieces[0] if len(pieces) == 1 else jnp.concatenate(pieces, axis=0)


def hnode_forward(x_row, params, y_ind=0):
    """Original HNode.forward semantics: single sample + scalar target -> scalar loss."""
    # TODO(synk): training-mode dropout would need pltpu.prng_seed /
    # pltpu.prng_random_bits masking + 1/(1-p) scaling; eval-mode identity here.
    y = jnp.asarray([y_ind], dtype=jnp.int32)
    return hnode_losses(x_row.reshape(1, -1), y, params)[0]


def reference_losses(x, y_ind, weight, bias):
    logits = x.astype(jnp.float32) @ weight.T.astype(jnp.float32) + bias
    lse = jax.nn.logsumexp(logits, axis=-1)
    picked = jnp.take_along_axis(logits, y_ind[:, None].astype(jnp.int32), axis=-1)[:, 0]
    return lse - picked


if __name__ == "__main__":
    in_features = 32      # Linear(in_features, num_children) at this HNode
    num_children = 4      # len(self.chn)
    batch = 256

    key = jax.random.PRNGKey(0)
    kx, kw, kb, ky = jax.random.split(key, 4)

    bound = 1.0 / math.sqrt(in_features)          # PyTorch nn.Linear init bound
    x = jax.random.normal(kx, (batch, in_features), dtype=jnp.float32)
    weight = jax.random.uniform(kw, (num_children, in_features),
                                minval=-bound, maxval=bound, dtype=jnp.float32)
    bias = jax.random.uniform(kb, (num_children,),
                              minval=-bound, maxval=bound, dtype=jnp.float32)
    y_ind = jax.random.randint(ky, (batch,), 0, num_children, dtype=jnp.int32)

    ref = reference_losses(x, y_ind, weight, bias)

    # f32 path: params prepared once; batch of 256 -> two parallel 128-row tiles.
    params = prepare_hnode_params(weight, bias)
    losses = jax.block_until_ready(jax.jit(hnode_losses)(x, y_ind, params))
    assert losses.shape == (batch,)
    assert jnp.allclose(losses, ref, atol=1e-4, rtol=1e-4), (losses[:4], ref[:4])

    # bf16 input path (halves the x DMA stream; f32 accumulation + softmax).
    params_bf16 = prepare_hnode_params(weight, bias, dtype=jnp.bfloat16)
    losses_bf16 = jax.block_until_ready(hnode_losses(x, y_ind, params_bf16))
    assert jnp.allclose(losses_bf16, ref, atol=5e-2, rtol=5e-2)

    # Original single-sample HNode.forward semantics (exercises the tail-tile call).
    loss0 = jax.block_until_ready(hnode_forward(x[0], params, y_ind=2))
    ref0 = reference_losses(x[:1], jnp.array([2], jnp.int32), weight, bias)[0]
    assert jnp.allclose(loss0, ref0, atol=1e-4, rtol=1e-4), (loss0, ref0)

    print("KERNEL_OK")
</pallas_src>

<mosaic_0001>
module attributes {stable_mosaic.version = 11 : i64} {
  func.func @hnode_ce_kernel(%arg0: i32, %arg1: memref<128x32xf32, #tpu.memory_space<vmem>>, %arg2: memref<32x128xf32, #tpu.memory_space<vmem>>, %arg3: memref<1x128xf32, #tpu.memory_space<vmem>>, %arg4: memref<128x1xi32, #tpu.memory_space<vmem>>, %arg5: memref<128x1xf32, #tpu.memory_space<vmem>>) attributes {dimension_semantics = [#tpu.dimension_semantics<parallel>], iteration_bounds = array<i64: 2>, scalar_prefetch = 0 : i64, scratch_operands = 0 : i64, tpu.core_type = #tpu.core_type<tc>, window_params = [{transform_indices = @transform_0, window_bounds = array<i64: 128, 32>}, {pipeline_mode = #tpu.pipeline_mode<synchronous>, transform_indices = @transform_1, window_bounds = array<i64: 32, 128>}, {pipeline_mode = #tpu.pipeline_mode<synchronous>, transform_indices = @transform_2, window_bounds = array<i64: 1, 128>}, {transform_indices = @transform_3, window_bounds = array<i64: 128, 1>}, {transform_indices = @transform_4, window_bounds = array<i64: 128, 1>}]} {
    %c0 = arith.constant 0 : index
    %c0_0 = arith.constant 0 : index
    %0 = vector.load %arg1[%c0, %c0_0] : memref<128x32xf32, #tpu.memory_space<vmem>>, vector<128x32xf32>
    %c0_1 = arith.constant 0 : index
    %c0_2 = arith.constant 0 : index
    %1 = vector.load %arg2[%c0_1, %c0_2] : memref<32x128xf32, #tpu.memory_space<vmem>>, vector<32x128xf32>
    %cst = arith.constant dense<0.000000e+00> : vector<128x128xf32>
    %2 = tpu.matmul %0, %1, %cst {dimension_numbers = #tpu.dot_dimension_numbers<[1], [0], [0], [1], [0, 0, 1, 1], [], []>} : vector<128x32xf32>, vector<32x128xf32>, vector<128x128xf32> -> vector<128x128xf32>
    %c0_3 = arith.constant 0 : index
    %c0_4 = arith.constant 0 : index
    %3 = vector.load %arg3[%c0_3, %c0_4] : memref<1x128xf32, #tpu.memory_space<vmem>>, vector<1x128xf32>
    %4 = vector.broadcast %3 : vector<1x128xf32> to vector<128x128xf32>
    %5 = arith.addf %2, %4 : vector<128x128xf32>
    %cst_5 = arith.constant dense<0xFF800000> : vector<128xf32>
    %6 = vector.multi_reduction <maximumf>, %5, %cst_5 [1] : vector<128x128xf32> to vector<128xf32>
    %7 = vector.shape_cast %6 : vector<128xf32> to vector<128x1xf32>
    %8 = vector.broadcast %7 : vector<128x1xf32> to vector<128x128xf32>
    %9 = arith.subf %5, %8 : vector<128x128xf32>
    %10 = math.exp %9 : vector<128x128xf32>
    %cst_6 = arith.constant dense<0.000000e+00> : vector<128xf32>
    %11 = vector.multi_reduction <add>, %10, %cst_6 [1] : vector<128x128xf32> to vector<128xf32>
    %12 = vector.shape_cast %11 : vector<128xf32> to vector<128x1xf32>
    %13 = math.log %12 : vector<128x1xf32>
    %14 = arith.addf %7, %13 : vector<128x1xf32>
    %15 = tpu.iota {dimensions = array<i32: 1>} : vector<128x128xi32>
    %c0_7 = arith.constant 0 : index
    %c0_8 = arith.constant 0 : index
    %16 = vector.load %arg4[%c0_7, %c0_8] : memref<128x1xi32, #tpu.memory_space<vmem>>, vector<128x1xi32>
    %17 = vector.broadcast %16 : vector<128x1xi32> to vector<128x128xi32>
    %18 = arith.cmpi eq, %15, %17 : vector<128x128xi32>
    %cst_9 = arith.constant 0.000000e+00 : f32
    %19 = vector.broadcast %cst_9 : f32 to vector<128x128xf32>
    %20 = arith.select %18, %5, %19 : vector<128x128xi1>, vector<128x128xf32>
    %cst_10 = arith.constant dense<0.000000e+00> : vector<128xf32>
    %21 = vector.multi_reduction <add>, %20, %cst_10 [1] : vector<128x128xf32> to vector<128xf32>
    %22 = vector.shape_cast %21 : vector<128xf32> to vector<128x1xf32>
    %23 = arith.subf %14, %22 : vector<128x1xf32>
    %c0_11 = arith.constant 0 : index
    %c0_12 = arith.constant 0 : index
    %24 = vector.load %arg5[%c0_11, %c0_12] : memref<128x1xf32, #tpu.memory_space<vmem>>, vector<128x1xf32>
    tpu.vector_store %arg5[%c0_11, %c0_12], %23 {strides = array<i32>} : memref<128x1xf32, #tpu.memory_space<vmem>>, vector<128x1xf32>,
    return
  }
  func.func @transform_0(%arg0: i32) -> (i32, i32) {
    %c0_i32 = arith.constant 0 : i32
    %c0_i32_0 = arith.constant 0 : i32
    return %arg0, %c0_i32 : i32, i32
  }
  func.func @transform_1(%arg0: i32) -> (i32, i32) {
    %c0_i32 = arith.constant 0 : i32
    %c0_i32_0 = arith.constant 0 : i32
    %c0_i32_1 = arith.constant 0 : i32
    return %c0_i32, %c0_i32_0 : i32, i32
  }
  func.func @transform_2(%arg0: i32) -> (i32, i32) {
    %c0_i32 = arith.constant 0 : i32
    %c0_i32_0 = arith.constant 0 : i32
    %c0_i32_1 = arith.constant 0 : i32
    return %c0_i32, %c0_i32_0 : i32, i32
  }
  func.func @transform_3(%arg0: i32) -> (i32, i32) {
    %c0_i32 = arith.constant 0 : i32
    %c0_i32_0 = arith.constant 0 : i32
    return %arg0, %c0_i32 : i32, i32
  }
  func.func @transform_4(%arg0: i32) -> (i32, i32) {
    %c0_i32 = arith.constant 0 : i32
    %c0_i32_0 = arith.constant 0 : i32
    return %arg0, %c0_i32 : i32, i32
  }
}

</mosaic_0001>

<llo_original>
// kernel: hnode_losses.1
$region0: #{hnode_losses.1}
  #allocation0 [shape = 'u32[]', space=smem, size = 0x4, offset = 0x4, fixed_abs, tag = 'smem constant byte address 0x4 - core index']
  #allocation1 [shape = 'u32[144,128]{1,0:T(1,128)}', space=vmem, size = 0x12000, scoped, tag = 'internal scratch']
  %s0 = inlined_call_operand.vmem [shape: f32[256,32], index: 0, kind: input, shape index: {}]
  %s1 = inlined_call_operand.vmem [shape: f32[32,128], index: 1, kind: input, shape index: {}]
  %s2 = inlined_call_operand.vmem [shape: f32[1,128], index: 2, kind: input, shape index: {}]
  %s3 = inlined_call_operand.vmem [shape: s32[256,1], index: 3, kind: input, shape index: {}]
  %s4 = inlined_call_operand.vmem [shape: f32[256,1], index: 4, kind: output, shape index: {}]
  %s5 = sld [smem:[#allocation0]]
  $region49: #{hnode_losses.1} parent=0
    _
  %s7 = ssub.s32 1, %s5
  %s8 = scalar_select 0, %s7, %s5
  loop: start=0, step=1, limit=4
  $region2: #{hnode_losses.1} parent=0 // loop_pre_header
    _
  $region3: #{hnode_losses.1} parent=0 // loop_header
    %s10 = sphi 0, %s14
    %p11 = scmp.ge.s32.totalorder %s10, 4
    %s20 = sphi 0, %s22
    %s23 = sphi 0, %s20
    %s24 = sphi 0, %s23
    %s40 = sphi 0, %s24
    %s44 = sphi 0, %s44
    %s46 = sphi 0, %s44
    %s47 = sphi 0, %s46
    %s61 = sphi 0, %s47
    %s65 = sphi 0, %s65
    %s67 = sphi 0, %s65
    %s68 = sphi 0, %s67
    %s82 = sphi 0, %s68
    %s88 = sphi 0, %s90
    %s91 = sphi 0, %s88
    %s92 = sphi 0, %s91
    %s108 = sphi 0, %s92
    %s114 = sphi 0, %s116
    %s117 = sphi 0, %s114
    %s118 = sphi 0, %s117
    %s134 = sphi 0, %s118
  $region4: #{hnode_losses.1} parent=0 // loop_header_branch
    %13 = sbr.rel (%p11) target = $region8
  $region5: #{hnode_losses.1} parent=0 // loop_body
    %s15 = ssub.s32 %s10, 1
    %s16 = ssub.s32 %s10, 2
    %s17 = sadd.s32 %s10, 1
    %s18 = ssub.s32 %s10, %s17
    %p19 = scmp.eq.s32.totalorder %s18, 0
    %s21 = sadd.s32 %s20, 1
    %s22 = scalar_select %p19, %s20, %s21
    %p25 = pneg %p19
    %p26 = scmp.eq.s32.totalorder %s10, 1
    %p27 = por %p25, %p26
    %p28 = scmp.ne.s32.totalorder %s20, %s23
    %p29 = scmp.eq.s32.totalorder %s10, 0
    %p30 = por %p28, %p29
    %p31 = scmp.ne.s32.totalorder %s20, %s23
    %p32 = scmp.eq.s32.totalorder %s15, 1
    %p33 = por %p31, %p32
    %p34 = scmp.ne.s32.totalorder %s23, %s24
    %p35 = scmp.eq.s32.totalorder %s15, 0
    %p36 = por %p34, %p35
    %p37 = scmp.ne.s32.totalorder %s23, %s24
    %p38 = scmp.eq.s32.totalorder %s16, 1
    %p39 = por %p37, %p38
    %p41 = scmp.ne.s32.totalorder %s24, %s40
    %p42 = scmp.eq.s32.totalorder %s16, 0
    %p43 = por %p41, %p42
    %s45 = sadd.s32 %s44, 1
    %p48 = scmp.eq.s32.totalorder %s10, 1
    %p49 = scmp.ne.s32.totalorder %s44, %s46
    %p50 = scmp.eq.s32.totalorder %s10, 0
    %p51 = por %p49, %p50
    %p52 = scmp.ne.s32.totalorder %s44, %s46
    %p53 = scmp.eq.s32.totalorder %s15, 1
    %p54 = por %p52, %p53
    %p55 = scmp.ne.s32.totalorder %s46, %s47
    %p56 = scmp.eq.s32.totalorder %s15, 0
    %p57 = por %p55, %p56
    %p58 = scmp.ne.s32.totalorder %s46, %s47
    %p59 = scmp.eq.s32.totalorder %s16, 1
    %p60 = por %p58, %p59
    %p62 = scmp.ne.s32.totalorder %s47, %s61
    %p63 = scmp.eq.s32.totalorder %s16, 0
    %p64 = por %p62, %p63
    %s66 = sadd.s32 %s65, 1
    %p69 = scmp.eq.s32.totalorder %s10, 1
    %p70 = scmp.ne.s32.totalorder %s65, %s67
    %p71 = scmp.eq.s32.totalorder %s10, 0
    %p72 = por %p70, %p71
    %p73 = scmp.ne.s32.totalorder %s65, %s67
    %p74 = scmp.eq.s32.totalorder %s15, 1
    %p75 = por %p73, %p74
    %p76 = scmp.ne.s32.totalorder %s67, %s68
    %p77 = scmp.eq.s32.totalorder %s15, 0
    %p78 = por %p76, %p77
    %p79 = scmp.ne.s32.totalorder %s67, %s68
    %p80 = scmp.eq.s32.totalorder %s16, 1
    %p81 = por %p79, %p80
    %p83 = scmp.ne.s32.totalorder %s68, %s82
    %p84 = scmp.eq.s32.totalorder %s16, 0
    %p85 = por %p83, %p84
    %s86 = ssub.s32 %s10, %s17
    %p87 = scmp.eq.s32.totalorder %s86, 0
    %s89 = sadd.s32 %s88, 1
    %s90 = scalar_select %p87, %s88, %s89
    %p93 = pneg %p87
    %p94 = scmp.eq.s32.totalorder %s10, 1
    %p95 = por %p93, %p94
    %p96 = scmp.ne.s32.totalorder %s88, %s91
    %p97 = scmp.eq.s32.totalorder %s10, 0
    %p98 = por %p96, %p97
    %p99 = scmp.ne.s32.totalorder %s88, %s91
    %p100 = scmp.eq.s32.totalorder %s15, 1
    %p101 = por %p99, %p100
    %p102 = scmp.ne.s32.totalorder %s91, %s92
    %p103 = scmp.eq.s32.totalorder %s15, 0
    %p104 = por %p102, %p103
    %p105 = scmp.ne.s32.totalorder %s91, %s92
    %p106 = scmp.eq.s32.totalorder %s16, 1
    %p107 = por %p105, %p106
    %p109 = scmp.ne.s32.totalorder %s92, %s108
    %p110 = scmp.eq.s32.totalorder %s16, 0
    %p111 = por %p109, %p110
    %s112 = ssub.s32 %s10, %s17
    %p113 = scmp.eq.s32.totalorder %s112, 0
    %s115 = sadd.s32 %s114, 1
    %s116 = scalar_select %p113, %s114, %s115
    %p119 = pneg %p113
    %p120 = scmp.eq.s32.totalorder %s10, 1
    %p121 = por %p119, %p120
    %p122 = scmp.ne.s32.totalorder %s114, %s117
    %p123 = scmp.eq.s32.totalorder %s10, 0
    %p124 = por %p122, %p123
    %p125 = scmp.ne.s32.totalorder %s114, %s117
    %p126 = scmp.eq.s32.totalorder %s15, 1
    %p127 = por %p125, %p126
    %p128 = scmp.ne.s32.totalorder %s117, %s118
    %p129 = scmp.eq.s32.totalorder %s15, 0
    %p130 = por %p128, %p129
    %p131 = scmp.ne.s32.totalorder %s117, %s118
    %p132 = scmp.eq.s32.totalorder %s16, 1
    %p133 = por %p131, %p132
    %p135 = scmp.ne.s32.totalorder %s118, %s134
    %p136 = scmp.eq.s32.totalorder %s16, 0
    %p137 = por %p135, %p136
    %p138 = scmp.le.s32.totalorder 1, %s10
    %p139 = scmp.lt.s32.totalorder %s10, 3
    %p140 = pnand %p138, %p139
    %p141 = pneg %p140
    // Predicated region
    $region9: #{hnode_losses.1} parent=5 // pred_check
      _
    $region10: #{hnode_losses.1} parent=5 // pred_check_branch
      %143 = sbr.rel (%p140) target = $region12
    $region11: #{hnode_losses.1} parent=5 // pred_region
      %s144 = ssub.s32 %s10, 1
      // Predicated region
      $region13: #{hnode_losses.1} parent=11 // pred_check
        %p145 = pneg %p57
      $region14: #{hnode_losses.1} parent=11 // pred_check_branch
        %147 = sbr.rel (%p145) target = $region16
      $region15: #{hnode_losses.1} parent=11 // pred_region
        _
      $region16: #{hnode_losses.1} parent=11 // pred_fallthru
        _
      // Predicated region
      $region17: #{hnode_losses.1} parent=11 // pred_check
        %p148 = pneg %p78
      $region18: #{hnode_losses.1} parent=11 // pred_check_branch
        %150 = sbr.rel (%p148) target = $region20
      $region19: #{hnode_losses.1} parent=11 // pred_region
        _
      $region20: #{hnode_losses.1} parent=11 // pred_fallthru
        _
    $region12: #{hnode_losses.1} parent=5 // pred_fallthru
      _
    %p151 = scmp.lt.s32.totalorder %s10, 2
    // Predicated region
    $region21: #{hnode_losses.1} parent=5 // pred_check
      %p152 = pneg %p151
    $region22: #{hnode_losses.1} parent=5 // pred_check_branch
      %154 = sbr.rel (%p152) target = $region24
    $region23: #{hnode_losses.1} parent=5 // pred_region
      // Predicated region
      $region25: #{hnode_losses.1} parent=23 // pred_check
        %p155 = pneg %p30
      $region26: #{hnode_losses.1} parent=23 // pred_check_branch
        %157 = sbr.rel (%p155) target = $region28
      $region27: #{hnode_losses.1} parent=23 // pred_region
        %s158 = smul.u32 16, %s10
        %p159 = scmp.lt.s32.totalorder %s158, 31
        %s160 = scalar_select %p159, %s158, 31
        %s161 = smul.addr %s160, 8
        %s162 = scalar_lea.vmem %s0, %s161
        %s163 = smul.u32 16, %s10
      $region28: #{hnode_losses.1} parent=23 // pred_fallthru
        _
      // Predicated region
      $region29: #{hnode_losses.1} parent=23 // pred_check
        %p164 = pneg %p98
      $region30: #{hnode_losses.1} parent=23 // pred_check_branch
        %166 = sbr.rel (%p164) target = $region32
      $region31: #{hnode_losses.1} parent=23 // pred_region
        %s167 = smul.u32 16, %s10
        %p168 = scmp.lt.s32.totalorder %s167, 31
        %s169 = scalar_select %p168, %s167, 31
        %s170 = smul.addr %s169, 8
        %s171 = scalar_lea.vmem %s3, %s170
        %s172 = smul.u32 16, %s10
      $region32: #{hnode_losses.1} parent=23 // pred_fallthru
        _
    $region24: #{hnode_losses.1} parent=5 // pred_fallthru
      _
    %p173 = scmp.le.s32.totalorder 1, %s10
    %p174 = scmp.lt.s32.totalorder %s10, 3
    %p175 = pnand %p173, %p174
    %p176 = pneg %p175
    // Predicated region
    $region33: #{hnode_losses.1} parent=5 // pred_check
      _
    $region34: #{hnode_losses.1} parent=5 // pred_check_branch
      %178 = sbr.rel (%p175) target = $region36
    $region35: #{hnode_losses.1} parent=5 // pred_region
      %s179 = ssub.s32 %s10, 1
      %s180 = smul.u32 16, %s15
      %p181 = scmp.lt.s32.totalorder %s180, 31
      %s182 = scalar_select %p181, %s180, 31
      %s183 = smul.addr %s182, 8
      %s184 = scalar_lea.vmem %s0, %s183
      %p185 = pneg %p36
      %p186 = pneg %p33
      %p187 = pneg %p57
      %p188 = pneg %p54
      %p189 = pneg %p78
      %p190 = pneg %p75
      %s191 = smul.u32 16, %s15
      %p192 = scmp.lt.s32.totalorder %s191, 31
      %s193 = scalar_select %p192, %s191, 31
      %s194 = smul.addr %s193, 8
      %s195 = scalar_lea.vmem %s3, %s194
      %p196 = pneg %p104
      %p197 = pneg %p101
      %p198 = pneg %p130
      %p199 = pneg %p127
      %s200 = smul.u32 16, %s15
      %p201 = scmp.lt.s32.totalorder %s200, 31
      %s202 = scalar_select %p201, %s200, 31
      %s203 = smul.addr %s202, 8
      %s204 = scalar_lea.vmem %s4, %s203
      %s205 = smul.u32 16, %s15
      %p206 = scmp.lt.s32.totalorder %s205, 31
      %s207 = scalar_select %p206, %s205, 31
      %s208 = smul.addr %s207, 8
      %s209 = scalar_lea.vmem %s0, %s208
      %s210 = smul.u32 16, %s15
      %s211 = smul.u32 16, %s15
      %p212 = scmp.lt.s32.totalorder %s211, 31
      %s213 = scalar_select %p212, %s211, 31
      %s214 = smul.addr %s213, 8
      %s215 = scalar_lea.vmem %s3, %s214
      %s216 = smul.u32 16, %s15
      %s217 = smul.u32 16, %s15
      %p218 = scmp.lt.s32.totalorder %s217, 31
      %s219 = scalar_select %p218, %s217, 31
      %s220 = smul.addr %s219, 8
      %s221 = scalar_lea.vmem %s4, %s220
      %s222 = smul.u32 16, %s15
      %v223 = vld [vmem:[%s209] sm:$0xff]
      %v224 = vld [vmem:[%s209 + $0x8] sm:$0xff]
      %v225 = vld [vmem:[%s209 + $0x10] sm:$0xff]
      %v226 = vld [vmem:[%s209 + $0x18] sm:$0xff]
      %v227 = vld [vmem:[%s209 + $0x20] sm:$0xff]
      %v228 = vld [vmem:[%s209 + $0x28] sm:$0xff]
      %v229 = vld [vmem:[%s209 + $0x30] sm:$0xff]
      %v230 = vld [vmem:[%s209 + $0x38] sm:$0xff]
      %v231 = vld [vmem:[%s209 + $0x40] sm:$0xff]
      %v232 = vld [vmem:[%s209 + $0x48] sm:$0xff]
      %v233 = vld [vmem:[%s209 + $0x50] sm:$0xff]
      %v234 = vld [vmem:[%s209 + $0x58] sm:$0xff]
      %v235 = vld [vmem:[%s209 + $0x60] sm:$0xff]
      %v236 = vld [vmem:[%s209 + $0x68] sm:$0xff]
      %v237 = vld [vmem:[%s209 + $0x70] sm:$0xff]
      %v238 = vld [vmem:[%s209 + $0x78] sm:$0xff]
      %v239 = vld [vmem:[%s1] sm:$0xff]
      %v240 = vld [vmem:[%s1 + $0x8] sm:$0xff]
      %v241 = vld [vmem:[%s1 + $0x10] sm:$0xff]
      %v242 = vld [vmem:[%s1 + $0x18] sm:$0xff]
      %v243 = vld [vmem:[%s2] sm:$0x1]
      %v245 = vlaneseq
      %v246 = vshrl.u32 %v245, 7
      %v247 = vsub.s32 0, %v246
      %v248 = vrot.slane %v243, %v247
      %vm250 = vcmask 261120
      %v252 = vsel %vm250, %v223, 0
      %v255 = vsel %vm250, %v224, 0
      %v258 = vsel %vm250, %v225, 0
      %v261 = vsel %vm250, %v226, 0
      %v264 = vsel %vm250, %v227, 0
      %v267 = vsel %vm250, %v228, 0
      %v270 = vsel %vm250, %v229, 0
      %v273 = vsel %vm250, %v230, 0
      %v276 = vsel %vm250, %v231, 0
      %v279 = vsel %vm250, %v232, 0
      %v282 = vsel %vm250, %v233, 0
      %v285 = vsel %vm250, %v234, 0
      %v288 = vsel %vm250, %v235, 0
      %v291 = vsel %vm250, %v236, 0
      %v294 = vsel %vm250, %v237, 0
      %v297 = vsel %vm250, %v238, 0
      %299 = vmatprep.subr.mxu0 0.0
      %300 = vmatpush1.msra.mxu0 0.0
      %301 = vmatprep.subr.mxu0 0.0
      %302 = vmatpush1.msra.mxu0 0.0
      %303 = vmatprep.subr.mxu0 0.0
      %304 = vmatpush1.msra.mxu0 0.0
      %305 = vmatprep.subr.mxu0 0.0
      %306 = vmatpush1.msra.mxu0 0.0
      %307 = vmatprep.subr.mxu0 0.0
      %308 = vmatpush1.msra.mxu0 0.0
      %309 = vmatprep.subr.mxu0 0.0
      %310 = vmatpush1.msra.mxu0 0.0
      %311 = vmatprep.subr.mxu0 0.0
      %312 = vmatpush1.msra.mxu0 0.0
      %313 = vmatprep.subr.mxu0 0.0
      %314 = vmatpush1.msra.mxu0 0.0
      %315 = vmatprep.subr.mxu0 0.0
      %316 = vmatpush1.msra.mxu0 0.0
      %317 = vmatprep.subr.mxu0 0.0
      %318 = vmatpush1.msra.mxu0 0.0
      %319 = vmatprep.subr.mxu0 0.0
      %320 = vmatpush1.msra.mxu0 0.0
      %321 = vmatprep.subr.mxu0 0.0
      %322 = vmatpush1.msra.mxu0 0.0
      %323 = vmatprep.subr.mxu0 0.0
      %324 = vmatpush1.msra.mxu0 %v242
      %325 = vmatprep.subr.mxu0 0.0
      %326 = vmatpush1.msra.mxu0 %v241
      %327 = vmatprep.subr.mxu0 0.0
      %328 = vmatpush1.msra.mxu0 %v240
      %329 = vmatprep.subr.mxu0 0.0
      %330 = vmatpush1.msra.mxu0 %v239
      %331 = vmatprep.subr.mxu0 0.0
      %332 = vmatpush2.msra.mxu0 0.0
      %333 = vmatprep.subr.mxu0 0.0
      %334 = vmatpush2.msra.mxu0 0.0
      %335 = vmatprep.subr.mxu0 0.0
      %336 = vmatpush2.msra.mxu0 0.0
      %337 = vmatprep.subr.mxu0 0.0
      %338 = vmatpush2.msra.mxu0 0.0
      %339 = vmatprep.subr.mxu0 0.0
      %340 = vmatpush2.msra.mxu0 0.0
      %341 = vmatprep.subr.mxu0 0.0
      %342 = vmatpush2.msra.mxu0 0.0
      %343 = vmatprep.subr.mxu0 0.0
      %344 = vmatpush2.msra.mxu0 0.0
      %345 = vmatprep.subr.mxu0 0.0
      %346 = vmatpush2.msra.mxu0 0.0
      %347 = vmatprep.subr.mxu0 0.0
      %348 = vmatpush2.msra.mxu0 0.0
      %349 = vmatprep.subr.mxu0 0.0
      %350 = vmatpush2.msra.mxu0 0.0
      %351 = vmatprep.subr.mxu0 0.0
      %352 = vmatpush2.msra.mxu0 0.0
      %353 = vmatprep.subr.mxu0 0.0
      %354 = vmatpush2.msra.mxu0 0.0
      %355 = vmatprep.subr.mxu0 0.0
      %356 = vmatpush2.msra.mxu0 0.0
      %357 = vmatprep.subr.mxu0 0.0
      %358 = vmatpush2.msra.mxu0 0.0
      %359 = vmatprep.subr.mxu0 0.0
      %360 = vmatpush2.msra.mxu0 0.0
      %361 = vmatprep.subr.mxu0 0.0
      %362 = vmatpush2.msra.mxu0 0.0
      %363 = vmatprep.mubr.f32.mxu0 0.0
      %364 = vmatmul.mubr.f32.gmra.mxu0 %v252
      %v365 = vpop.f32.mrf.mxu0
      %v366 = vadd.f32 %v248, %v365
      %v367 = vpop.f32.mrf.mxu0
      %368 = vmatprep.mubr.f32.mxu0 0.0
      %369 = vmatmul.mubr.f32.gmra.mxu0 %v255
      %v370 = vpop.f32.mrf.mxu0
      %v371 = vadd.f32 %v248, %v370
      %v372 = vpop.f32.mrf.mxu0
      %373 = vmatprep.mubr.f32.mxu0 0.0
      %374 = vmatmul.mubr.f32.gmra.mxu0 %v258
      %v375 = vpop.f32.mrf.mxu0
      %v376 = vadd.f32 %v248, %v375
      %v377 = vpop.f32.mrf.mxu0
      %378 = vmatprep.mubr.f32.mxu0 0.0
      %379 = vmatmul.mubr.f32.gmra.mxu0 %v261
      %v380 = vpop.f32.mrf.mxu0
      %v381 = vadd.f32 %v248, %v380
      %v382 = vpop.f32.mrf.mxu0
      %383 = vmatprep.mubr.f32.mxu0 0.0
      %384 = vmatmul.mubr.f32.gmra.mxu0 %v264
      %v385 = vpop.f32.mrf.mxu0
      %v386 = vadd.f32 %v248, %v385
      %v387 = vpop.f32.mrf.mxu0
      %388 = vmatprep.mubr.f32.mxu0 0.0
      %389 = vmatmul.mubr.f32.gmra.mxu0 %v267
      %v390 = vpop.f32.mrf.mxu0
      %v391 = vadd.f32 %v248, %v390
      %v392 = vpop.f32.mrf.mxu0
      %393 = vmatprep.mubr.f32.mxu0 0.0
      %394 = vmatmul.mubr.f32.gmra.mxu0 %v270
      %v395 = vpop.f32.mrf.mxu0
      %v396 = vadd.f32 %v248, %v395
      %v397 = vpop.f32.mrf.mxu0
      %398 = vmatprep.mubr.f32.mxu0 0.0
      %399 = vmatmul.mubr.f32.gmra.mxu0 %v273
      %v400 = vpop.f32.mrf.mxu0
      %v401 = vadd.f32 %v248, %v400
      %v402 = vpop.f32.mrf.mxu0
      %403 = vmatprep.mubr.f32.mxu0 0.0
      %404 = vmatmul.mubr.f32.gmra.mxu0 %v276
      %v405 = vpop.f32.mrf.mxu0
      %v406 = vadd.f32 %v248, %v405
      %v407 = vpop.f32.mrf.mxu0
      %408 = vmatprep.mubr.f32.mxu0 0.0
      %409 = vmatmul.mubr.f32.gmra.mxu0 %v279
      %v410 = vpop.f32.mrf.mxu0
      %v411 = vadd.f32 %v248, %v410
      %v412 = vpop.f32.mrf.mxu0
      %413 = vmatprep.mubr.f32.mxu0 0.0
      %414 = vmatmul.mubr.f32.gmra.mxu0 %v282
      %v415 = vpop.f32.mrf.mxu0
      %v416 = vadd.f32 %v248, %v415
      %v417 = vpop.f32.mrf.mxu0
      %418 = vmatprep.mubr.f32.mxu0 0.0
      %419 = vmatmul.mubr.f32.gmra.mxu0 %v285
      %v420 = vpop.f32.mrf.mxu0
      %v421 = vadd.f32 %v248, %v420
      %v422 = vpop.f32.mrf.mxu0
      %423 = vmatprep.mubr.f32.mxu0 0.0
      %424 = vmatmul.mubr.f32.gmra.mxu0 %v288
      %v425 = vpop.f32.mrf.mxu0
      %v426 = vadd.f32 %v248, %v425
      %v427 = vpop.f32.mrf.mxu0
      %428 = vmatprep.mubr.f32.mxu0 0.0
      %429 = vmatmul.mubr.f32.gmra.mxu0 %v291
      %v430 = vpop.f32.mrf.mxu0
      %v431 = vadd.f32 %v248, %v430
      %v432 = vpop.f32.mrf.mxu0
      %433 = vmatprep.mubr.f32.mxu0 0.0
      %434 = vmatmul.mubr.f32.gmra.mxu0 %v294
      %v435 = vpop.f32.mrf.mxu0
      %v436 = vadd.f32 %v248, %v435
      %v437 = vpop.f32.mrf.mxu0
      %438 = vmatprep.mubr.f32.mxu0 0.0
      %439 = vmatmul.mubr.f32.gmra.mxu0 %v297
      %v440 = vpop.f32.mrf.mxu0
      %v441 = vadd.f32 %v248, %v440
      %v442 = vpop.f32.mrf.mxu0
      %443 = vdwg.mxu0
      %444 = vmax.xlane.f32.xlu0 %v366
      %v445 = vpop.xlane.xlu0 %444
      %446 = vmax.xlane.f32.xlu0 %v371
      %v447 = vpop.xlane.xlu0 %446
      %448 = vmax.xlane.f32.xlu0 %v376
      %v449 = vpop.xlane.xlu0 %448
      %450 = vmax.xlane.f32.xlu0 %v381
      %v451 = vpop.xlane.xlu0 %450
      %452 = vmax.xlane.f32.xlu0 %v386
      %v453 = vpop.xlane.xlu0 %452
      %454 = vmax.xlane.f32.xlu0 %v391
      %v455 = vpop.xlane.xlu0 %454
      %456 = vmax.xlane.f32.xlu0 %v396
      %v457 = vpop.xlane.xlu0 %456
      %458 = vmax.xlane.f32.xlu0 %v401
      %v459 = vpop.xlane.xlu0 %458
      %460 = vmax.xlane.f32.xlu0 %v406
      %v461 = vpop.xlane.xlu0 %460
      %462 = vmax.xlane.f32.xlu0 %v411
      %v463 = vpop.xlane.xlu0 %462
      %464 = vmax.xlane.f32.xlu0 %v416
      %v465 = vpop.xlane.xlu0 %464
      %466 = vmax.xlane.f32.xlu0 %v421
      %v467 = vpop.xlane.xlu0 %466
      %468 = vmax.xlane.f32.xlu0 %v426
      %v469 = vpop.xlane.xlu0 %468
      %470 = vmax.xlane.f32.xlu0 %v431
      %v471 = vpop.xlane.xlu0 %470
      %472 = vmax.xlane.f32.xlu0 %v436
      %v473 = vpop.xlane.xlu0 %472
      %474 = vmax.xlane.f32.xlu0 %v441
      %v475 = vpop.xlane.xlu0 %474
      %v476 = vsub.f32 %v366, %v445
      %v477 = vsub.f32 %v371, %v447
      %v478 = vsub.f32 %v376, %v449
      %v479 = vsub.f32 %v381, %v451
      %v480 = vsub.f32 %v386, %v453
      %v481 = vsub.f32 %v391, %v455
      %v482 = vsub.f32 %v396, %v457
      %v483 = vsub.f32 %v401, %v459
      %v484 = vsub.f32 %v406, %v461
      %v485 = vsub.f32 %v411, %v463
      %v486 = vsub.f32 %v416, %v465
      %v487 = vsub.f32 %v421, %v467
      %v488 = vsub.f32 %v426, %v469
      %v489 = vsub.f32 %v431, %v471
      %v490 = vsub.f32 %v436, %v473
      %v491 = vsub.f32 %v441, %v475
      %v492 = vmul.f32 %v476, 1.442695
      %v493 = vpow.pop %v492
      %v494 = vmul.f32 %v477, 1.442695
      %v495 = vpow.pop %v494
      %v496 = vmul.f32 %v478, 1.442695
      %v497 = vpow.pop %v496
      %v498 = vmul.f32 %v479, 1.442695
      %v499 = vpow.pop %v498
      %v500 = vmul.f32 %v480, 1.442695
      %v501 = vpow.pop %v500
      %v502 = vmul.f32 %v481, 1.442695
      %v503 = vpow.pop %v502
      %v504 = vmul.f32 %v482, 1.442695
      %v505 = vpow.pop %v504
      %v506 = vmul.f32 %v483, 1.442695
      %v507 = vpow.pop %v506
      %v508 = vmul.f32 %v484, 1.442695
      %v509 = vpow.pop %v508
      %v510 = vmul.f32 %v485, 1.442695
      %v511 = vpow.pop %v510
      %v512 = vmul.f32 %v486, 1.442695
      %v513 = vpow.pop %v512
      %v514 = vmul.f32 %v487, 1.442695
      %v515 = vpow.pop %v514
      %v516 = vmul.f32 %v488, 1.442695
      %v517 = vpow.pop %v516
      %v518 = vmul.f32 %v489, 1.442695
      %v519 = vpow.pop %v518
      %v520 = vmul.f32 %v490, 1.442695
      %v521 = vpow.pop %v520
      %v522 = vmul.f32 %v491, 1.442695
      %v523 = vpow.pop %v522
      %524 = vadd.xlane.f32.xlu0 %v493
      %v525 = vpop.xlane.xlu0 %524
      %526 = vadd.xlane.f32.xlu0 %v495
      %v527 = vpop.xlane.xlu0 %526
      %528 = vadd.xlane.f32.xlu0 %v497
      %v529 = vpop.xlane.xlu0 %528
      %530 = vadd.xlane.f32.xlu0 %v499
      %v531 = vpop.xlane.xlu0 %530
      %532 = vadd.xlane.f32.xlu0 %v501
      %v533 = vpop.xlane.xlu0 %532
      %534 = vadd.xlane.f32.xlu0 %v503
      %v535 = vpop.xlane.xlu0 %534
      %536 = vadd.xlane.f32.xlu0 %v505
      %v537 = vpop.xlane.xlu0 %536
      %538 = vadd.xlane.f32.xlu0 %v507
      %v539 = vpop.xlane.xlu0 %538
      %540 = vadd.xlane.f32.xlu0 %v509
      %v541 = vpop.xlane.xlu0 %540
      %542 = vadd.xlane.f32.xlu0 %v511
      %v543 = vpop.xlane.xlu0 %542
      %544 = vadd.xlane.f32.xlu0 %v513
      %v545 = vpop.xlane.xlu0 %544
      %546 = vadd.xlane.f32.xlu0 %v515
      %v547 = vpop.xlane.xlu0 %546
      %548 = vadd.xlane.f32.xlu0 %v517
      %v549 = vpop.xlane.xlu0 %548
      %550 = vadd.xlane.f32.xlu0 %v519
      %v551 = vpop.xlane.xlu0 %550
      %552 = vadd.xlane.f32.xlu0 %v521
      %v553 = vpop.xlane.xlu0 %552
      %554 = vadd.xlane.f32.xlu0 %v523
      %v555 = vpop.xlane.xlu0 %554
      %v556 = vlog2.pop %v525
      %v557 = vmul.f32 %v556, 0.6931472
      %v558 = vlog2.pop %v527
      %v559 = vmul.f32 %v558, 0.6931472
      %v560 = vlog2.pop %v529
      %v561 = vmul.f32 %v560, 0.6931472
      %v562 = vlog2.pop %v531
      %v563 = vmul.f32 %v562, 0.6931472
      %v564 = vlog2.pop %v533
      %v565 = vmul.f32 %v564, 0.6931472
      %v566 = vlog2.pop %v535
      %v567 = vmul.f32 %v566, 0.6931472
      %v568 = vlog2.pop %v537
      %v569 = vmul.f32 %v568, 0.6931472
      %v570 = vlog2.pop %v539
      %v571 = vmul.f32 %v570, 0.6931472
      %v572 = vlog2.pop %v541
      %v573 = vmul.f32 %v572, 0.6931472
      %v574 = vlog2.pop %v543
      %v575 = vmul.f32 %v574, 0.6931472
      %v576 = vlog2.pop %v545
      %v577 = vmul.f32 %v576, 0.6931472
      %v578 = vlog2.pop %v547
      %v579 = vmul.f32 %v578, 0.6931472
      %v580 = vlog2.pop %v549
      %v581 = vmul.f32 %v580, 0.6931472
      %v582 = vlog2.pop %v551
      %v583 = vmul.f32 %v582, 0.6931472
      %v584 = vlog2.pop %v553
      %v585 = vmul.f32 %v584, 0.6931472
      %v586 = vlog2.pop %v555
      %v587 = vmul.f32 %v586, 0.6931472
      %v588 = vadd.f32 %v445, %v557
      %v589 = vadd.f32 %v447, %v559
      %v590 = vadd.f32 %v449, %v561
      %v591 = vadd.f32 %v451, %v563
      %v592 = vadd.f32 %v453, %v565
      %v593 = vadd.f32 %v455, %v567
      %v594 = vadd.f32 %v457, %v569
      %v595 = vadd.f32 %v459, %v571
      %v596 = vadd.f32 %v461, %v573
      %v597 = vadd.f32 %v463, %v575
      %v598 = vadd.f32 %v465, %v577
      %v599 = vadd.f32 %v467, %v579
      %v600 = vadd.f32 %v469, %v581
      %v601 = vadd.f32 %v471, %v583
      %v602 = vadd.f32 %v473, %v585
      %v603 = vadd.f32 %v475, %v587
      %v604 = vlaneseq
      %v605 = vand.u32 %v604, 127
      %v606 = vld [vmem:[%s215] sm:$0xff]
      %v607 = vld [vmem:[%s215 + $0x8] sm:$0xff]
      %v608 = vld [vmem:[%s215 + $0x10] sm:$0xff]
      %v609 = vld [vmem:[%s215 + $0x18] sm:$0xff]
      %v610 = vld [vmem:[%s215 + $0x20] sm:$0xff]
      %v611 = vld [vmem:[%s215 + $0x28] sm:$0xff]
      %v612 = vld [vmem:[%s215 + $0x30] sm:$0xff]
      %v613 = vld [vmem:[%s215 + $0x38] sm:$0xff]
      %v614 = vld [vmem:[%s215 + $0x40] sm:$0xff]
      %v615 = vld [vmem:[%s215 + $0x48] sm:$0xff]
      %v616 = vld [vmem:[%s215 + $0x50] sm:$0xff]
      %v617 = vld [vmem:[%s215 + $0x58] sm:$0xff]
      %v618 = vld [vmem:[%s215 + $0x60] sm:$0xff]
      %v619 = vld [vmem:[%s215 + $0x68] sm:$0xff]
      %v620 = vld [vmem:[%s215 + $0x70] sm:$0xff]
      %v621 = vld [vmem:[%s215 + $0x78] sm:$0xff]
      %622 = vset.pattern.permute.xlu0 0
      %623 = vperm.xlu0 %622, %v606
      %v624 = vpop.permute.xlu0 %623
      %625 = vset.pattern.permute.xlu0 0
      %626 = vperm.xlu0 %625, %v607
      %v627 = vpop.permute.xlu0 %626
      %628 = vset.pattern.permute.xlu0 0
      %629 = vperm.xlu0 %628, %v608
      %v630 = vpop.permute.xlu0 %629
      %631 = vset.pattern.permute.xlu0 0
      %632 = vperm.xlu0 %631, %v609
      %v633 = vpop.permute.xlu0 %632
      %634 = vset.pattern.permute.xlu0 0
      %635 = vperm.xlu0 %634, %v610
      %v636 = vpop.permute.xlu0 %635
      %637 = vset.pattern.permute.xlu0 0
      %638 = vperm.xlu0 %637, %v611
      %v639 = vpop.permute.xlu0 %638
      %640 = vset.pattern.permute.xlu0 0
      %641 = vperm.xlu0 %640, %v612
      %v642 = vpop.permute.xlu0 %641
      %643 = vset.pattern.permute.xlu0 0
      %644 = vperm.xlu0 %643, %v613
      %v645 = vpop.permute.xlu0 %644
      %646 = vset.pattern.permute.xlu0 0
      %647 = vperm.xlu0 %646, %v614
      %v648 = vpop.permute.xlu0 %647
      %649 = vset.pattern.permute.xlu0 0
      %650 = vperm.xlu0 %649, %v615
      %v651 = vpop.permute.xlu0 %650
      %652 = vset.pattern.permute.xlu0 0
      %653 = vperm.xlu0 %652, %v616
      %v654 = vpop.permute.xlu0 %653
      %655 = vset.pattern.permute.xlu0 0
      %656 = vperm.xlu0 %655, %v617
      %v657 = vpop.permute.xlu0 %656
      %658 = vset.pattern.permute.xlu0 0
      %659 = vperm.xlu0 %658, %v618
      %v660 = vpop.permute.xlu0 %659
      %661 = vset.pattern.permute.xlu0 0
      %662 = vperm.xlu0 %661, %v619
      %v663 = vpop.permute.xlu0 %662
      %664 = vset.pattern.permute.xlu0 0
      %665 = vperm.xlu0 %664, %v620
      %v666 = vpop.permute.xlu0 %665
      %667 = vset.pattern.permute.xlu0 0
      %668 = vperm.xlu0 %667, %v621
      %v669 = vpop.permute.xlu0 %668
      %vm670 = vcmp.eq.s32.totalorder %v605, %v624
      %vm671 = vcmp.eq.s32.totalorder %v605, %v627
      %vm672 = vcmp.eq.s32.totalorder %v605, %v630
      %vm673 = vcmp.eq.s32.totalorder %v605, %v633
      %vm674 = vcmp.eq.s32.totalorder %v605, %v636
      %vm675 = vcmp.eq.s32.totalorder %v605, %v639
      %vm676 = vcmp.eq.s32.totalorder %v605, %v642
      %vm677 = vcmp.eq.s32.totalorder %v605, %v645
      %vm678 = vcmp.eq.s32.totalorder %v605, %v648
      %vm679 = vcmp.eq.s32.totalorder %v605, %v651
      %vm680 = vcmp.eq.s32.totalorder %v605, %v654
      %vm681 = vcmp.eq.s32.totalorder %v605, %v657
      %vm682 = vcmp.eq.s32.totalorder %v605, %v660
      %vm683 = vcmp.eq.s32.totalorder %v605, %v663
      %vm684 = vcmp.eq.s32.totalorder %v605, %v666
      %vm685 = vcmp.eq.s32.totalorder %v605, %v669
      %v686 = vsel %vm670, %v366, 0.0
      %v687 = vsel %vm671, %v371, 0.0
      %v688 = vsel %vm672, %v376, 0.0
      %v689 = vsel %vm673, %v381, 0.0
      %v690 = vsel %vm674, %v386, 0.0
      %v691 = vsel %vm675, %v391, 0.0
      %v692 = vsel %vm676, %v396, 0.0
      %v693 = vsel %vm677, %v401, 0.0
      %v694 = vsel %vm678, %v406, 0.0
      %v695 = vsel %vm679, %v411, 0.0
      %v696 = vsel %vm680, %v416, 0.0
      %v697 = vsel %vm681, %v421, 0.0
      %v698 = vsel %vm682, %v426, 0.0
      %v699 = vsel %vm683, %v431, 0.0
      %v700 = vsel %vm684, %v436, 0.0
      %v701 = vsel %vm685, %v441, 0.0
      %702 = vadd.xlane.f32.xlu0 %v686
      %v703 = vpop.xlane.xlu0 %702
      %704 = vadd.xlane.f32.xlu0 %v687
      %v705 = vpop.xlane.xlu0 %704
      %706 = vadd.xlane.f32.xlu0 %v688
      %v707 = vpop.xlane.xlu0 %706
      %708 = vadd.xlane.f32.xlu0 %v689
      %v709 = vpop.xlane.xlu0 %708
      %710 = vadd.xlane.f32.xlu0 %v690
      %v711 = vpop.xlane.xlu0 %710
      %712 = vadd.xlane.f32.xlu0 %v691
      %v713 = vpop.xlane.xlu0 %712
      %714 = vadd.xlane.f32.xlu0 %v692
      %v715 = vpop.xlane.xlu0 %714
      %716 = vadd.xlane.f32.xlu0 %v693
      %v717 = vpop.xlane.xlu0 %716
      %718 = vadd.xlane.f32.xlu0 %v694
      %v719 = vpop.xlane.xlu0 %718
      %720 = vadd.xlane.f32.xlu0 %v695
      %v721 = vpop.xlane.xlu0 %720
      %722 = vadd.xlane.f32.xlu0 %v696
      %v723 = vpop.xlane.xlu0 %722
      %724 = vadd.xlane.f32.xlu0 %v697
      %v725 = vpop.xlane.xlu0 %724
      %726 = vadd.xlane.f32.xlu0 %v698
      %v727 = vpop.xlane.xlu0 %726
      %728 = vadd.xlane.f32.xlu0 %v699
      %v729 = vpop.xlane.xlu0 %728
      %730 = vadd.xlane.f32.xlu0 %v700
      %v731 = vpop.xlane.xlu0 %730
      %732 = vadd.xlane.f32.xlu0 %v701
      %v733 = vpop.xlane.xlu0 %732
      %v734 = vsub.f32 %v588, %v703
      %v735 = vsub.f32 %v589, %v705
      %v736 = vsub.f32 %v590, %v707
      %v737 = vsub.f32 %v591, %v709
      %v738 = vsub.f32 %v592, %v711
      %v739 = vsub.f32 %v593, %v713
      %v740 = vsub.f32 %v594, %v715
      %v741 = vsub.f32 %v595, %v717
      %v742 = vsub.f32 %v596, %v719
      %v743 = vsub.f32 %v597, %v721
      %v744 = vsub.f32 %v598, %v723
      %v745 = vsub.f32 %v599, %v725
      %v746 = vsub.f32 %v600, %v727
      %v747 = vsub.f32 %v601, %v729
      %v748 = vsub.f32 %v602, %v731
      %v749 = vsub.f32 %v603, %v733
      %vm750 = vcmask 7168
      %751 = vst.msk [vmem:[%s221] sm:$0xff] %vm750, %v734
      %752 = vst.msk [vmem:[%s221 + $0x8] sm:$0xff] %vm750, %v735
      %753 = vst.msk [vmem:[%s221 + $0x10] sm:$0xff] %vm750, %v736
      %754 = vst.msk [vmem:[%s221 + $0x18] sm:$0xff] %vm750, %v737
      %755 = vst.msk [vmem:[%s221 + $0x20] sm:$0xff] %vm750, %v738
      %756 = vst.msk [vmem:[%s221 + $0x28] sm:$0xff] %vm750, %v739
      %757 = vst.msk [vmem:[%s221 + $0x30] sm:$0xff] %vm750, %v740
      %758 = vst.msk [vmem:[%s221 + $0x38] sm:$0xff] %vm750, %v741
      %759 = vst.msk [vmem:[%s221 + $0x40] sm:$0xff] %vm750, %v742
      %760 = vst.msk [vmem:[%s221 + $0x48] sm:$0xff] %vm750, %v743
      %761 = vst.msk [vmem:[%s221 + $0x50] sm:$0xff] %vm750, %v744
      %762 = vst.msk [vmem:[%s221 + $0x58] sm:$0xff] %vm750, %v745
      %763 = vst.msk [vmem:[%s221 + $0x60] sm:$0xff] %vm750, %v746
      %764 = vst.msk [vmem:[%s221 + $0x68] sm:$0xff] %vm750, %v747
      %765 = vst.msk [vmem:[%s221 + $0x70] sm:$0xff] %vm750, %v748
      %766 = vst.msk [vmem:[%s221 + $0x78] sm:$0xff] %vm750, %v749
      %s767 = smul.u32 16, %s15
      %p768 = scmp.lt.s32.totalorder %s767, 31
      %s769 = scalar_select %p768, %s767, 31
      %s770 = smul.addr %s769, 8
      %s771 = scalar_lea.vmem %s4, %s770
      // Predicated region
      $region37: #{hnode_losses.1} parent=35 // pred_check
        %p772 = pneg %p127
      $region38: #{hnode_losses.1} parent=35 // pred_check_branch
        %774 = sbr.rel (%p772) target = $region40
      $region39: #{hnode_losses.1} parent=35 // pred_region
        %s775 = smul.u32 16, %s15
      $region40: #{hnode_losses.1} parent=35 // pred_fallthru
        _
    $region36: #{hnode_losses.1} parent=5 // pred_fallthru
      _
    %p776 = scmp.le.s32.totalorder 2, %s10
    // Predicated region
    $region41: #{hnode_losses.1} parent=5 // pred_check
      %p777 = pneg %p776
    $region42: #{hnode_losses.1} parent=5 // pred_check_branch
      %779 = sbr.rel (%p777) target = $region44
    $region43: #{hnode_losses.1} parent=5 // pred_region
      %s780 = ssub.s32 %s10, 2
      // Predicated region
      $region45: #{hnode_losses.1} parent=43 // pred_check
        %p781 = pneg %p133
      $region46: #{hnode_losses.1} parent=43 // pred_check_branch
        %783 = sbr.rel (%p781) target = $region48
      $region47: #{hnode_losses.1} parent=43 // pred_region
        %s784 = smul.u32 16, %s16
        %p785 = scmp.lt.s32.totalorder %s784, 31
        %s786 = scalar_select %p785, %s784, 31
        %s787 = smul.addr %s786, 8
        %s788 = scalar_lea.vmem %s4, %s787
      $region48: #{hnode_losses.1} parent=43 // pred_fallthru
        _
    $region44: #{hnode_losses.1} parent=5 // pred_fallthru
      _
  $region6: #{hnode_losses.1} parent=0 // loop_footer
    %s14 = sadd.s32 1, %s10
  $region7: #{hnode_losses.1} parent=0 // loop_footer_branch
    %9 = sbr.rel target = $region3
  $region8: #{hnode_losses.1} parent=0 // loop_exit
    _

</llo_original>
